<compile_context>
chip_gen: v6e
topology: v6e:2x2x1
jax: 0.10.0
libtpu: 0.0.40
codegen_flags: <defaults>
</compile_context>

<pallas_src>
import jax
import jax.numpy as jnp
from jax.experimental import pallas as pl
from jax.experimental.pallas import tpu as pltpu

HIDDEN = 512


def _round_up(x, m):
    return ((x + m - 1) // m) * m


def _largest_tile(total, cap):
    """Largest multiple of 128 that divides `total` (a multiple of 128) and is
    <= cap.  Falls back to 128."""
    best = 128
    d = 128
    while d <= min(total, cap):
        if total % d == 0:
            best = d
        d += 128
    return best


def _pad2d(a, shape, dtype):
    """Zero-pad 2-D `a` to `shape` and cast to `dtype`.  Skips the copy when
    already aligned; fuses the cast into the pad (single HBM pass)."""
    if a.shape == tuple(shape):
        return a if a.dtype == dtype else a.astype(dtype)
    out = jnp.zeros(shape, dtype)
    return out.at[: a.shape[0], : a.shape[1]].set(a.astype(dtype))


def _mlp_kernel(x_ref, w1_ref, b1_ref, w2_ref, b2_ref, o_ref, acc_ref):
    j = pl.program_id(1)                 # output (label) tile
    k = pl.program_id(2)                 # reduction tile over in_dim
    k_last = pl.num_programs(2) - 1

    # ---- layer 1: acc = x @ w1 + b1, K-sliced.  Only computed on the first
    # output tile; acc persists across the j sweep for this batch tile. ------
    @pl.when(jnp.logical_and(j == 0, k == 0))
    def _():
        acc_ref[...] = b1_ref[...] + jnp.dot(
            x_ref[...], w1_ref[...], preferred_element_type=jnp.float32)

    @pl.when(jnp.logical_and(j == 0, k > 0))
    def _():
        acc_ref[...] += jnp.dot(
            x_ref[...], w1_ref[...], preferred_element_type=jnp.float32)

    # ---- layer 2 epilogue for this output tile -----------------------------
    @pl.when(k == k_last)
    def _():
        h = jnp.maximum(acc_ref[...], 0.0)                 # ReLU in f32
        y = jnp.dot(h.astype(jnp.bfloat16), w2_ref[...],
                    preferred_element_type=jnp.float32)
        o_ref[...] = (y + b2_ref[...]).astype(o_ref.dtype)


def multi_label_mlp(x, w1, b1, w2, b2, *,
                    tile_b=512, tile_k_cap=1024, tile_n_cap=2048):
    """x: (B, in_dim); w1: (in_dim, 512); b1: (512,); w2: (512, out_dim);
    b2: (out_dim,).  Returns (B, out_dim) f32."""
    B, in_dim = x.shape
    out_dim = w2.shape[1]
    assert w1.shape == (in_dim, HIDDEN) and w2.shape[0] == HIDDEN

    # ---- tile / padding selection ------------------------------------------
    in_p = _round_up(in_dim, 128)
    tile_k = _largest_tile(in_p, tile_k_cap)       # tile_k | in_p: no K over-pad

    out_p = _round_up(out_dim, 128)
    if out_p <= tile_n_cap:                        # w2 / output fully resident
        tile_n = out_p
    else:                                          # bound VMEM for huge label sets
        tile_n = 1024
        out_p = _round_up(out_p, tile_n)

    b8 = _round_up(B, 8)
    # v7x megacore: keep >= 2 batch tiles when the batch permits so the
    # "parallel" axis shards across both TensorCores.
    max_tb = b8 if b8 < 16 else _round_up((b8 + 1) // 2, 8)
    tile_b = min(_round_up(tile_b, 8), max_tb)
    b_p = _round_up(B, tile_b)

    n_btiles = b_p // tile_b
    n_ntiles = out_p // tile_n
    n_ktiles = in_p // tile_k
    k_last = n_ktiles - 1

    # ---- pad + cast once (no-ops when already aligned) ---------------------
    xp = _pad2d(x, (b_p, in_p), jnp.bfloat16)
    w1p = _pad2d(w1, (in_p, HIDDEN), jnp.bfloat16)
    w2p = _pad2d(w2, (HIDDEN, out_p), jnp.bfloat16)
    b1p = jnp.reshape(b1, (1, HIDDEN)).astype(jnp.float32)
    b2p = _pad2d(jnp.reshape(b2, (1, -1)), (1, out_p), jnp.float32)

    # ---- index maps ---------------------------------------------------------
    if n_ntiles == 1:
        x_map = lambda i, j, k: (i, k)
        w1_map = lambda i, j, k: (k, 0)
        # constant-index operands: single pipeline buffer (no dead 2nd buffer)
        w2_spec = pl.BlockSpec((HIDDEN, tile_n), lambda i, j, k: (0, 0),
                               pipeline_mode=pl.Buffered(1))
        b2_spec = pl.BlockSpec((1, tile_n), lambda i, j, k: (0, 0),
                               pipeline_mode=pl.Buffered(1))
    else:
        # Freeze x / w1 blocks after the first output tile's K sweep so they
        # are not re-streamed for j > 0 (layer-1 compute is skipped there).
        x_map = lambda i, j, k: (i, jnp.where(j == 0, k, k_last))
        w1_map = lambda i, j, k: (jnp.where(j == 0, k, k_last), 0)
        w2_spec = pl.BlockSpec((HIDDEN, tile_n), lambda i, j, k: (0, j))
        b2_spec = pl.BlockSpec((1, tile_n), lambda i, j, k: (0, j))

    b1_spec = pl.BlockSpec((1, HIDDEN), lambda i, j, k: (0, 0),
                           pipeline_mode=pl.Buffered(1))

    # ---- explicit VMEM budget (scoped defaults are only 16/32 MiB) ---------
    w2_bufs = 1 if n_ntiles == 1 else 2
    vmem_need = (2 * tile_b * tile_k * 2          # x, bf16, double buffered
                 + 2 * tile_k * HIDDEN * 2        # w1, bf16, double buffered
                 + w2_bufs * HIDDEN * tile_n * 2  # w2, bf16
                 + 2 * tile_b * tile_n * 4        # out, f32, double buffered
                 + tile_b * HIDDEN * 4            # acc scratch
                 + 8 * HIDDEN * 4 + 8 * tile_n * 4)   # biases (sublane padded)
    vmem_limit = min(max(32 << 20, int(vmem_need * 3 // 2) + (4 << 20)), 64 << 20)

    # ---- truthful cost estimate (advisory) ----------------------------------
    flops = 2 * b_p * in_p * HIDDEN + 2 * b_p * HIDDEN * out_p
    w2_reads = 1 if n_ntiles == 1 else n_btiles
    bytes_accessed = (b_p * in_p * 2                       # x read once (bf16)
                      + n_btiles * in_p * HIDDEN * 2       # w1 per batch tile
                      + w2_reads * HIDDEN * out_p * 2      # w2
                      + HIDDEN * 4 + out_p * 4             # biases
                      + b_p * out_p * 4)                   # output

    out = pl.pallas_call(
        _mlp_kernel,
        out_shape=jax.ShapeDtypeStruct((b_p, out_p), jnp.float32),
        grid_spec=pltpu.PrefetchScalarGridSpec(
            num_scalar_prefetch=0,
            grid=(n_btiles, n_ntiles, n_ktiles),
            in_specs=[
                pl.BlockSpec((tile_b, tile_k), x_map),     # x tile (bf16)
                pl.BlockSpec((tile_k, HIDDEN), w1_map),    # w1 K-slab (bf16)
                b1_spec,                                   # b1 resident
                w2_spec,                                   # w2 resident / N-tiled
                b2_spec,                                   # b2
            ],
            out_specs=pl.BlockSpec((tile_b, tile_n), lambda i, j, k: (i, j)),
            scratch_shapes=[pltpu.VMEM((tile_b, HIDDEN), jnp.float32)],
        ),
        compiler_params=pltpu.CompilerParams(
            dimension_semantics=("parallel", "arbitrary", "arbitrary"),
            vmem_limit_bytes=vmem_limit),
        cost_estimate=pl.CostEstimate(
            flops=flops, bytes_accessed=bytes_accessed, transcendentals=0),
    )(xp, w1p, b1p, w2p, b2p)

    return out[:B, :out_dim]


if __name__ == "__main__":
    B, IN_DIM, OUT_DIM = 8, 32, 16

    key = jax.random.PRNGKey(0)
    kx, k1, k2, k3, k4 = jax.random.split(key, 5)
    x = jax.random.normal(kx, (B, IN_DIM), jnp.float32)
    # PyTorch Linear stores weight as (out, in); kernel keeps (in, out).
    w1 = jax.random.normal(k1, (IN_DIM, HIDDEN), jnp.float32) * 0.02
    b1 = jax.random.normal(k2, (HIDDEN,), jnp.float32) * 0.01
    w2 = jax.random.normal(k3, (HIDDEN, OUT_DIM), jnp.float32) * 0.02
    b2 = jax.random.normal(k4, (OUT_DIM,), jnp.float32) * 0.01

    out = multi_label_mlp(x, w1, b1, w2, b2)
    out = jax.block_until_ready(out)

    # Reference in plain-JAX f32.  Kernel uses bf16 MXU inputs with f32
    # accumulation, so tolerance is widened versus the pure-f32 reference.
    ref = jnp.maximum(x @ w1 + b1, 0.0) @ w2 + b2
    assert out.shape == (B, OUT_DIM)
    assert jnp.allclose(out, ref, atol=1e-2, rtol=1e-2), \
        float(jnp.max(jnp.abs(out - ref)))

    print("KERNEL_OK")
</pallas_src>

<mosaic_0001>
module attributes {stable_mosaic.version = 11 : i64} {
  func.func @_mlp_kernel(%arg0: i32, %arg1: i32, %arg2: i32, %arg3: memref<8x128xbf16, #tpu.memory_space<vmem>>, %arg4: memref<128x512xbf16, #tpu.memory_space<vmem>>, %arg5: memref<1x512xf32, #tpu.memory_space<vmem>>, %arg6: memref<512x128xbf16, #tpu.memory_space<vmem>>, %arg7: memref<1x128xf32, #tpu.memory_space<vmem>>, %arg8: memref<8x128xf32, #tpu.memory_space<vmem>>, %arg9: memref<8x512xf32, #tpu.memory_space<vmem>>) attributes {dimension_semantics = [#tpu.dimension_semantics<parallel>, #tpu.dimension_semantics<arbitrary>, #tpu.dimension_semantics<arbitrary>], iteration_bounds = array<i64: 1, 1, 1>, scalar_prefetch = 0 : i64, scratch_operands = 1 : i64, tpu.core_type = #tpu.core_type<tc>, window_params = [{transform_indices = @transform_0, window_bounds = array<i64: 8, 128>}, {transform_indices = @transform_1, window_bounds = array<i64: 128, 512>}, {pipeline_mode = #tpu.pipeline_mode<synchronous>, transform_indices = @transform_2, window_bounds = array<i64: 1, 512>}, {pipeline_mode = #tpu.pipeline_mode<synchronous>, transform_indices = @transform_3, window_bounds = array<i64: 512, 128>}, {pipeline_mode = #tpu.pipeline_mode<synchronous>, transform_indices = @transform_4, window_bounds = array<i64: 1, 128>}, {transform_indices = @transform_5, window_bounds = array<i64: 8, 128>}]} {
    %c0_i32 = arith.constant 0 : i32
    %0 = arith.cmpi eq, %arg1, %c0_i32 : i32
    %c0_i32_0 = arith.constant 0 : i32
    %1 = arith.cmpi eq, %arg2, %c0_i32_0 : i32
    %2 = arith.andi %0, %1 : i1
    %3 = arith.extui %2 : i1 to i32
    %c0_i32_1 = arith.constant 0 : i32
    %4 = arith.cmpi ne, %3, %c0_i32_1 : i32
    scf.if %4 {
      %c0 = arith.constant 0 : index
      %c0_7 = arith.constant 0 : index
      %13 = vector.load %arg5[%c0, %c0_7] : memref<1x512xf32, #tpu.memory_space<vmem>>, vector<1x512xf32>
      %c0_8 = arith.constant 0 : index
      %c0_9 = arith.constant 0 : index
      %14 = vector.load %arg3[%c0_8, %c0_9] : memref<8x128xbf16, #tpu.memory_space<vmem>>, vector<8x128xbf16>
      %c0_10 = arith.constant 0 : index
      %c0_11 = arith.constant 0 : index
      %15 = vector.load %arg4[%c0_10, %c0_11] : memref<128x512xbf16, #tpu.memory_space<vmem>>, vector<128x512xbf16>
      %cst = arith.constant dense<0.000000e+00> : vector<8x512xf32>
      %16 = tpu.matmul %14, %15, %cst {dimension_numbers = #tpu.dot_dimension_numbers<[1], [0], [0], [1], [0, 0, 1, 1], [], []>} : vector<8x128xbf16>, vector<128x512xbf16>, vector<8x512xf32> -> vector<8x512xf32>
      %17 = vector.broadcast %13 : vector<1x512xf32> to vector<8x512xf32>
      %18 = arith.addf %17, %16 : vector<8x512xf32>
      %c0_12 = arith.constant 0 : index
      %c0_13 = arith.constant 0 : index
      %19 = vector.load %arg9[%c0_12, %c0_13] : memref<8x512xf32, #tpu.memory_space<vmem>>, vector<8x512xf32>
      tpu.vector_store %arg9[%c0_12, %c0_13], %18 {strides = array<i32>} : memref<8x512xf32, #tpu.memory_space<vmem>>, vector<8x512xf32>,
    } else {
    }
    %c0_i32_2 = arith.constant 0 : i32
    %5 = arith.cmpi eq, %arg1, %c0_i32_2 : i32
    %c0_i32_3 = arith.constant 0 : i32
    %6 = arith.cmpi sgt, %arg2, %c0_i32_3 : i32
    %7 = arith.andi %5, %6 : i1
    %8 = arith.extui %7 : i1 to i32
    %c0_i32_4 = arith.constant 0 : i32
    %9 = arith.cmpi ne, %8, %c0_i32_4 : i32
    scf.if %9 {
      %c0 = arith.constant 0 : index
      %c0_7 = arith.constant 0 : index
      %13 = vector.load %arg9[%c0, %c0_7] : memref<8x512xf32, #tpu.memory_space<vmem>>, vector<8x512xf32>
      %c0_8 = arith.constant 0 : index
      %c0_9 = arith.constant 0 : index
      %14 = vector.load %arg3[%c0_8, %c0_9] : memref<8x128xbf16, #tpu.memory_space<vmem>>, vector<8x128xbf16>
      %c0_10 = arith.constant 0 : index
      %c0_11 = arith.constant 0 : index
      %15 = vector.load %arg4[%c0_10, %c0_11] : memref<128x512xbf16, #tpu.memory_space<vmem>>, vector<128x512xbf16>
      %cst = arith.constant dense<0.000000e+00> : vector<8x512xf32>
      %16 = tpu.matmul %14, %15, %cst {dimension_numbers = #tpu.dot_dimension_numbers<[1], [0], [0], [1], [0, 0, 1, 1], [], []>} : vector<8x128xbf16>, vector<128x512xbf16>, vector<8x512xf32> -> vector<8x512xf32>
      %17 = arith.addf %13, %16 : vector<8x512xf32>
      %c0_12 = arith.constant 0 : index
      %c0_13 = arith.constant 0 : index
      %18 = vector.load %arg9[%c0_12, %c0_13] : memref<8x512xf32, #tpu.memory_space<vmem>>, vector<8x512xf32>
      tpu.vector_store %arg9[%c0_12, %c0_13], %17 {strides = array<i32>} : memref<8x512xf32, #tpu.memory_space<vmem>>, vector<8x512xf32>,
    } else {
    }
    %c0_i32_5 = arith.constant 0 : i32
    %10 = arith.cmpi eq, %arg2, %c0_i32_5 : i32
    %11 = arith.extui %10 : i1 to i32
    %c0_i32_6 = arith.constant 0 : i32
    %12 = arith.cmpi ne, %11, %c0_i32_6 : i32
    scf.if %12 {
      %c0 = arith.constant 0 : index
      %c0_7 = arith.constant 0 : index
      %13 = vector.load %arg9[%c0, %c0_7] : memref<8x512xf32, #tpu.memory_space<vmem>>, vector<8x512xf32>
      %cst = arith.constant 0.000000e+00 : f32
      %14 = vector.broadcast %cst : f32 to vector<8x512xf32>
      %15 = arith.maximumf %13, %14 : vector<8x512xf32>
      %16 = arith.truncf %15 : vector<8x512xf32> to vector<8x512xbf16>
      %c0_8 = arith.constant 0 : index
      %c0_9 = arith.constant 0 : index
      %17 = vector.load %arg6[%c0_8, %c0_9] : memref<512x128xbf16, #tpu.memory_space<vmem>>, vector<512x128xbf16>
      %cst_10 = arith.constant dense<0.000000e+00> : vector<8x128xf32>
      %18 = tpu.matmul %16, %17, %cst_10 {dimension_numbers = #tpu.dot_dimension_numbers<[1], [0], [0], [1], [0, 0, 1, 1], [], []>} : vector<8x512xbf16>, vector<512x128xbf16>, vector<8x128xf32> -> vector<8x128xf32>
      %c0_11 = arith.constant 0 : index
      %c0_12 = arith.constant 0 : index
      %19 = vector.load %arg7[%c0_11, %c0_12] : memref<1x128xf32, #tpu.memory_space<vmem>>, vector<1x128xf32>
      %20 = vector.broadcast %19 : vector<1x128xf32> to vector<8x128xf32>
      %21 = arith.addf %18, %20 : vector<8x128xf32>
      %c0_13 = arith.constant 0 : index
      %c0_14 = arith.constant 0 : index
      %22 = vector.load %arg8[%c0_13, %c0_14] : memref<8x128xf32, #tpu.memory_space<vmem>>, vector<8x128xf32>
      tpu.vector_store %arg8[%c0_13, %c0_14], %21 {strides = array<i32>} : memref<8x128xf32, #tpu.memory_space<vmem>>, vector<8x128xf32>,
    } else {
    }
    return
  }
  func.func @transform_0(%arg0: i32, %arg1: i32, %arg2: i32) -> (i32, i32) {
    %c0_i32 = arith.constant 0 : i32
    return %arg0, %arg2 : i32, i32
  }
  func.func @transform_1(%arg0: i32, %arg1: i32, %arg2: i32) -> (i32, i32) {
    %c0_i32 = arith.constant 0 : i32
    %c0_i32_0 = arith.constant 0 : i32
    return %arg2, %c0_i32 : i32, i32
  }
  func.func @transform_2(%arg0: i32, %arg1: i32, %arg2: i32) -> (i32, i32) {
    %c0_i32 = arith.constant 0 : i32
    %c0_i32_0 = arith.constant 0 : i32
    %c0_i32_1 = arith.constant 0 : i32
    return %c0_i32, %c0_i32_0 : i32, i32
  }
  func.func @transform_3(%arg0: i32, %arg1: i32, %arg2: i32) -> (i32, i32) {
    %c0_i32 = arith.constant 0 : i32
    %c0_i32_0 = arith.constant 0 : i32
    %c0_i32_1 = arith.constant 0 : i32
    return %c0_i32, %c0_i32_0 : i32, i32
  }
  func.func @transform_4(%arg0: i32, %arg1: i32, %arg2: i32) -> (i32, i32) {
    %c0_i32 = arith.constant 0 : i32
    %c0_i32_0 = arith.constant 0 : i32
    %c0_i32_1 = arith.constant 0 : i32
    return %c0_i32, %c0_i32_0 : i32, i32
  }
  func.func @transform_5(%arg0: i32, %arg1: i32, %arg2: i32) -> (i32, i32) {
    %c0_i32 = arith.constant 0 : i32
    return %arg0, %arg1 : i32, i32
  }
}

</mosaic_0001>

<llo_original>
// kernel: tpu_custom_call.1
$region0: #{tpu_custom_call.1}
  #allocation0 [shape = 'u32[]', space=smem, size = 0x4, offset = 0x4, fixed_abs, tag = 'smem constant byte address 0x4 - core index']
  #allocation1 [shape = 'u32[144,128]{1,0:T(1,128)}', space=vmem, size = 0x12000, scoped, tag = 'internal scratch']
  #allocation2 [shape = 'f32[8,512]{1,0:T(8,128)}', space=vmem, size = 0x4000, scoped, tag = 'scratch operand']
  %s0 = inlined_call_operand.hbm [shape: bf16[8,128], index: 0, kind: input, shape index: {}]
  %s1 = inlined_call_operand.hbm [shape: bf16[128,512], index: 1, kind: input, shape index: {}]
  %s2 = inlined_call_operand.hbm [shape: f32[1,512], index: 2, kind: input, shape index: {}]
  %s3 = inlined_call_operand.hbm [shape: bf16[512,128], index: 3, kind: input, shape index: {}]
  %s4 = inlined_call_operand.vmem [shape: f32[1,128], index: 4, kind: input, shape index: {}]
  %s5 = inlined_call_operand.hbm [shape: f32[8,128], index: 5, kind: output, shape index: {}]
  %s6 = sld [smem:[#allocation0]]
  $region58: #{tpu_custom_call.1} parent=0
    _
  %s8 = ssub.s32 1, %s6
  %s9 = scalar_select 0, %s8, %s6
  $region1: #{tpu_custom_call.1} parent=0
    #allocation3 [shape = 'u8[2048]{0}', space=vmem, size = 0x800, scoped, tag = 'input window, operand 0, single buffered']
    #allocation4 [shape = 's32[1]{0}', space=sflag, size = 0x4, scoped, tag = 'scoped memory for tpu_custom_call.1']
    #allocation5 [shape = 's32[1]{0}', space=sflag, size = 0x4, scoped, tag = 'scoped memory for tpu_custom_call.1']
    #allocation6 [shape = 'u8[131072]{0}', space=vmem, size = 0x20000, scoped, tag = 'input window, operand 1, single buffered']
    #allocation7 [shape = 's32[1]{0}', space=sflag, size = 0x4, scoped, tag = 'scoped memory for tpu_custom_call.1']
    #allocation8 [shape = 'u8[2048]{0}', space=vmem, size = 0x800, scoped, tag = 'input window, operand 2, single buffered']
    #allocation9 [shape = 'u8[131072]{0}', space=vmem, size = 0x20000, scoped, tag = 'input window, operand 3, single buffered']
    #allocation10 [shape = 's32[1]{0}', space=sflag, size = 0x4, scoped, tag = 'scoped memory for tpu_custom_call.1']
    #allocation11 [shape = 'u8[4096]{0}', space=vmem, size = 0x1000, scoped, tag = 'output window, operand 0, single buffered']
    %10 = vsyncpa [#allocation4], 0
    %11 = vsyncpa [#allocation7], 0
    %12 = vsyncpa [#allocation10], 0
    %13 = vsyncpa [#allocation5], 0
    // Predicated region
    $region2: #{tpu_custom_call.1} parent=1 // pred_check
      _
    $region3: #{tpu_custom_call.1} parent=1 // pred_check_branch
      %15 = sbr.rel (0) target = $region5
    $region4: #{tpu_custom_call.1} parent=1 // pred_region
      %s17 = ssub.s32 64, 64
      %18 = vsyncadd [#allocation4], %s17
      %s20 = sshll.u32 [#allocation3], 4
      %s21 = int_to_ptr.vmem [resolvable:$true] %s20
      %23 = dma.hbm_to_vmem [thread:$0]  %s0, 64, %s21, [#allocation4]
    $region5: #{tpu_custom_call.1} parent=1 // pred_fallthru
      _
    // Predicated region
    $region6: #{tpu_custom_call.1} parent=1 // pred_check
      _
    $region7: #{tpu_custom_call.1} parent=1 // pred_check_branch
      %25 = sbr.rel (0) target = $region9
    $region8: #{tpu_custom_call.1} parent=1 // pred_region
      %s27 = ssub.s32 4096, 4096
      %28 = vsyncadd [#allocation7], %s27
      %s29 = sshll.u32 [#allocation6], 4
      %s30 = int_to_ptr.vmem [resolvable:$true] %s29
      %35 = dma.hbm_to_vmem [thread:$0]  %s1, 4096, %s30, [#allocation7], 256, 256, 16
    $region9: #{tpu_custom_call.1} parent=1 // pred_fallthru
      _
    // Predicated region
    $region10: #{tpu_custom_call.1} parent=1 // pred_check
      _
    $region11: #{tpu_custom_call.1} parent=1 // pred_check_branch
      %37 = sbr.rel (0) target = $region13
    $region12: #{tpu_custom_call.1} parent=1 // pred_region
      %s39 = ssub.s32 64, 64
      %40 = vsyncadd [#allocation7], %s39
      %s42 = sshll.u32 [#allocation8], 4
      %s43 = int_to_ptr.vmem [resolvable:$true] %s42
      %45 = dma.hbm_to_vmem [thread:$0]  %s2, 64, %s43, [#allocation7]
    $region13: #{tpu_custom_call.1} parent=1 // pred_fallthru
      _
    // Predicated region
    $region14: #{tpu_custom_call.1} parent=1 // pred_check
      _
    $region15: #{tpu_custom_call.1} parent=1 // pred_check_branch
      %47 = sbr.rel (0) target = $region17
    $region16: #{tpu_custom_call.1} parent=1 // pred_region
      %s49 = ssub.s32 4096, 4096
      %50 = vsyncadd [#allocation10], %s49
      %s51 = sshll.u32 [#allocation9], 4
      %s52 = int_to_ptr.vmem [resolvable:$true] %s51
      %57 = dma.hbm_to_vmem [thread:$0]  %s3, 4096, %s52, [#allocation10], 64, 64, 4
    $region17: #{tpu_custom_call.1} parent=1 // pred_fallthru
      _
    // Predicated region
    $region18: #{tpu_custom_call.1} parent=1 // pred_check
      _
    $region19: #{tpu_custom_call.1} parent=1 // pred_check_branch
      %59 = sbr.rel (0) target = $region21
    $region20: #{tpu_custom_call.1} parent=1 // pred_region
      _
    $region21: #{tpu_custom_call.1} parent=1 // pred_fallthru
      _
    // Predicated region
    $region22: #{tpu_custom_call.1} parent=1 // pred_check
      _
    $region23: #{tpu_custom_call.1} parent=1 // pred_check_branch
      %61 = sbr.rel (0) target = $region25
    $region24: #{tpu_custom_call.1} parent=1 // pred_region
      %62 = dma.done [#allocation4], 64
    $region25: #{tpu_custom_call.1} parent=1 // pred_fallthru
      _
    // Predicated region
    $region26: #{tpu_custom_call.1} parent=1 // pred_check
      _
    $region27: #{tpu_custom_call.1} parent=1 // pred_check_branch
      %64 = sbr.rel (0) target = $region29
    $region28: #{tpu_custom_call.1} parent=1 // pred_region
      %65 = dma.done [#allocation7], 4096
    $region29: #{tpu_custom_call.1} parent=1 // pred_fallthru
      _
    // Predicated region
    $region30: #{tpu_custom_call.1} parent=1 // pred_check
      _
    $region31: #{tpu_custom_call.1} parent=1 // pred_check_branch
      %67 = sbr.rel (0) target = $region33
    $region32: #{tpu_custom_call.1} parent=1 // pred_region
      %68 = dma.done [#allocation7], 64
    $region33: #{tpu_custom_call.1} parent=1 // pred_fallthru
      _
    // Predicated region
    $region34: #{tpu_custom_call.1} parent=1 // pred_check
      _
    $region35: #{tpu_custom_call.1} parent=1 // pred_check_branch
      %70 = sbr.rel (0) target = $region37
    $region36: #{tpu_custom_call.1} parent=1 // pred_region
      %71 = dma.done [#allocation10], 4096
    $region37: #{tpu_custom_call.1} parent=1 // pred_fallthru
      _
    %p73 = scmp.eq.s32.totalorder 0, 0
    %p74 = scmp.eq.s32.totalorder 0, 0
    %p75 = pnand %p73, %p74
    %p76 = pneg %p75
    // Predicated region
    $region38: #{tpu_custom_call.1} parent=1 // pred_check
      _
    $region39: #{tpu_custom_call.1} parent=1 // pred_check_branch
      %78 = sbr.rel (%p75) target = $region41
    $region40: #{tpu_custom_call.1} parent=1 // pred_region
      %v79 = vld [vmem:[#allocation8] sm:$0xf]
      %v80 = vld [vmem:[#allocation3] sm:$0xf]
      %v81 = vld [vmem:[#allocation6] sm:$0xff]
      %v82 = vld [vmem:[#allocation6 + $0x8] sm:$0xff]
      %v83 = vld [vmem:[#allocation6 + $0x10] sm:$0xff]
      %v84 = vld [vmem:[#allocation6 + $0x18] sm:$0xff]
      %v85 = vld [vmem:[#allocation6 + $0x20] sm:$0xff]
      %v86 = vld [vmem:[#allocation6 + $0x28] sm:$0xff]
      %v87 = vld [vmem:[#allocation6 + $0x30] sm:$0xff]
      %v88 = vld [vmem:[#allocation6 + $0x38] sm:$0xff]
      %v89 = vld [vmem:[#allocation6 + $0x40] sm:$0xff]
      %v90 = vld [vmem:[#allocation6 + $0x48] sm:$0xff]
      %v91 = vld [vmem:[#allocation6 + $0x50] sm:$0xff]
      %v92 = vld [vmem:[#allocation6 + $0x58] sm:$0xff]
      %v93 = vld [vmem:[#allocation6 + $0x60] sm:$0xff]
      %v94 = vld [vmem:[#allocation6 + $0x68] sm:$0xff]
      %v95 = vld [vmem:[#allocation6 + $0x70] sm:$0xff]
      %v96 = vld [vmem:[#allocation6 + $0x78] sm:$0xff]
      %v97 = vld [vmem:[#allocation6 + $0x80] sm:$0xff]
      %v98 = vld [vmem:[#allocation6 + $0x88] sm:$0xff]
      %v99 = vld [vmem:[#allocation6 + $0x90] sm:$0xff]
      %v100 = vld [vmem:[#allocation6 + $0x98] sm:$0xff]
      %v101 = vld [vmem:[#allocation6 + $0xa0] sm:$0xff]
      %v102 = vld [vmem:[#allocation6 + $0xa8] sm:$0xff]
      %v103 = vld [vmem:[#allocation6 + $0xb0] sm:$0xff]
      %v104 = vld [vmem:[#allocation6 + $0xb8] sm:$0xff]
      %v105 = vld [vmem:[#allocation6 + $0xc0] sm:$0xff]
      %v106 = vld [vmem:[#allocation6 + $0xc8] sm:$0xff]
      %v107 = vld [vmem:[#allocation6 + $0xd0] sm:$0xff]
      %v108 = vld [vmem:[#allocation6 + $0xd8] sm:$0xff]
      %v109 = vld [vmem:[#allocation6 + $0xe0] sm:$0xff]
      %v110 = vld [vmem:[#allocation6 + $0xe8] sm:$0xff]
      %v111 = vld [vmem:[#allocation6 + $0xf0] sm:$0xff]
      %v112 = vld [vmem:[#allocation6 + $0xf8] sm:$0xff]
      %v145 = vunpack.c.l.b16 %v81
      %v146 = vunpack.c.h.b16 %v81
      %v147 = vunpack.c.l.b16 %v82
      %v148 = vunpack.c.h.b16 %v82
      %v149 = vunpack.c.l.b16 %v83
      %v150 = vunpack.c.h.b16 %v83
      %v151 = vunpack.c.l.b16 %v84
      %v152 = vunpack.c.h.b16 %v84
      %v153 = vunpack.c.l.b16 %v85
      %v154 = vunpack.c.h.b16 %v85
      %v155 = vunpack.c.l.b16 %v86
      %v156 = vunpack.c.h.b16 %v86
      %v157 = vunpack.c.l.b16 %v87
      %v158 = vunpack.c.h.b16 %v87
      %v159 = vunpack.c.l.b16 %v88
      %v160 = vunpack.c.h.b16 %v88
      %v161 = vunpack.c.l.b16 %v89
      %v162 = vunpack.c.h.b16 %v89
      %v163 = vunpack.c.l.b16 %v90
      %v164 = vunpack.c.h.b16 %v90
      %v165 = vunpack.c.l.b16 %v91
      %v166 = vunpack.c.h.b16 %v91
      %v167 = vunpack.c.l.b16 %v92
      %v168 = vunpack.c.h.b16 %v92
      %v169 = vunpack.c.l.b16 %v93
      %v170 = vunpack.c.h.b16 %v93
      %v171 = vunpack.c.l.b16 %v94
      %v172 = vunpack.c.h.b16 %v94
      %v173 = vunpack.c.l.b16 %v95
      %v174 = vunpack.c.h.b16 %v95
      %v175 = vunpack.c.l.b16 %v96
      %v176 = vunpack.c.h.b16 %v96
      %v177 = vunpack.c.l.b16 %v97
      %v178 = vunpack.c.h.b16 %v97
      %v179 = vunpack.c.l.b16 %v98
      %v180 = vunpack.c.h.b16 %v98
      %v181 = vunpack.c.l.b16 %v99
      %v182 = vunpack.c.h.b16 %v99
      %v183 = vunpack.c.l.b16 %v100
      %v184 = vunpack.c.h.b16 %v100
      %v185 = vunpack.c.l.b16 %v101
      %v186 = vunpack.c.h.b16 %v101
      %v187 = vunpack.c.l.b16 %v102
      %v188 = vunpack.c.h.b16 %v102
      %v189 = vunpack.c.l.b16 %v103
      %v190 = vunpack.c.h.b16 %v103
      %v191 = vunpack.c.l.b16 %v104
      %v192 = vunpack.c.h.b16 %v104
      %v193 = vunpack.c.l.b16 %v105
      %v194 = vunpack.c.h.b16 %v105
      %v195 = vunpack.c.l.b16 %v106
      %v196 = vunpack.c.h.b16 %v106
      %v197 = vunpack.c.l.b16 %v107
      %v198 = vunpack.c.h.b16 %v107
      %v199 = vunpack.c.l.b16 %v108
      %v200 = vunpack.c.h.b16 %v108
      %v201 = vunpack.c.l.b16 %v109
      %v202 = vunpack.c.h.b16 %v109
      %v203 = vunpack.c.l.b16 %v110
      %v204 = vunpack.c.h.b16 %v110
      %v205 = vunpack.c.l.b16 %v111
      %v206 = vunpack.c.h.b16 %v111
      %v207 = vunpack.c.l.b16 %v112
      %v208 = vunpack.c.h.b16 %v112
      %v209 = vpack.c.b16 %v149, %v145
      %v210 = vpack.c.b16 %v150, %v146
      %v211 = vpack.c.b16 %v151, %v147
      %v212 = vpack.c.b16 %v152, %v148
      %v213 = vpack.c.b16 %v157, %v153
      %v214 = vpack.c.b16 %v158, %v154
      %v215 = vpack.c.b16 %v159, %v155
      %v216 = vpack.c.b16 %v160, %v156
      %v217 = vpack.c.b16 %v165, %v161
      %v218 = vpack.c.b16 %v166, %v162
      %v219 = vpack.c.b16 %v167, %v163
      %v220 = vpack.c.b16 %v168, %v164
      %v221 = vpack.c.b16 %v173, %v169
      %v222 = vpack.c.b16 %v174, %v170
      %v223 = vpack.c.b16 %v175, %v171
      %v224 = vpack.c.b16 %v176, %v172
      %v225 = vpack.c.b16 %v181, %v177
      %v226 = vpack.c.b16 %v182, %v178
      %v227 = vpack.c.b16 %v183, %v179
      %v228 = vpack.c.b16 %v184, %v180
      %v229 = vpack.c.b16 %v189, %v185
      %v230 = vpack.c.b16 %v190, %v186
      %v231 = vpack.c.b16 %v191, %v187
      %v232 = vpack.c.b16 %v192, %v188
      %v233 = vpack.c.b16 %v197, %v193
      %v234 = vpack.c.b16 %v198, %v194
      %v235 = vpack.c.b16 %v199, %v195
      %v236 = vpack.c.b16 %v200, %v196
      %v237 = vpack.c.b16 %v205, %v201
      %v238 = vpack.c.b16 %v206, %v202
      %v239 = vpack.c.b16 %v207, %v203
      %v240 = vpack.c.b16 %v208, %v204
      %273 = vmatprep.subr.bf16.mxu0 %v238
      %274 = vmatpush1.bf16.msra.mxu0 %v237
      %275 = vmatprep.subr.bf16.mxu0 %v234
      %276 = vmatpush1.bf16.msra.mxu0 %v233
      %277 = vmatprep.subr.bf16.mxu0 %v230
      %278 = vmatpush1.bf16.msra.mxu0 %v229
      %279 = vmatprep.subr.bf16.mxu0 %v226
      %280 = vmatpush1.bf16.msra.mxu0 %v225
      %281 = vmatprep.subr.bf16.mxu0 %v222
      %282 = vmatpush1.bf16.msra.mxu0 %v221
      %283 = vmatprep.subr.bf16.mxu0 %v218
      %284 = vmatpush1.bf16.msra.mxu0 %v217
      %285 = vmatprep.subr.bf16.mxu0 %v214
      %286 = vmatpush1.bf16.msra.mxu0 %v213
      %287 = vmatprep.subr.bf16.mxu0 %v210
      %288 = vmatpush1.bf16.msra.mxu0 %v209
      %289 = vmatprep.subr.bf16.mxu0 0
      %290 = vmatpush2.bf16.msra.mxu0 0
      %291 = vmatprep.subr.bf16.mxu0 0
      %292 = vmatpush2.bf16.msra.mxu0 0
      %293 = vmatprep.subr.bf16.mxu0 0
      %294 = vmatpush2.bf16.msra.mxu0 0
      %295 = vmatprep.subr.bf16.mxu0 0
      %296 = vmatpush2.bf16.msra.mxu0 0
      %297 = vmatprep.subr.bf16.mxu0 0
      %298 = vmatpush2.bf16.msra.mxu0 0
      %299 = vmatprep.subr.bf16.mxu0 0
      %300 = vmatpush2.bf16.msra.mxu0 0
      %301 = vmatprep.subr.bf16.mxu0 0
      %302 = vmatpush2.bf16.msra.mxu0 0
      %303 = vmatprep.subr.bf16.mxu0 0
      %304 = vmatpush2.bf16.msra.mxu0 0
      %305 = vmatprep.mubr.bf16.mxu0 0
      %306 = vmatmul.mubr.bf16.gmra.mxu0 %v80
      %v307 = vpop.f32.mrf.mxu0
      %v308 = vadd.f32 0.0, %v307
      %v309 = vpop.f32.mrf.mxu0
      %v310 = vadd.f32 0.0, %v309
      %v311 = vpop.f32.mrf.mxu0
      %v312 = vpop.f32.mrf.mxu0
      %313 = vdwg.mxu0
      %314 = vmatprep.subr.bf16.mxu0 %v240
      %315 = vmatpush1.bf16.msra.mxu0 %v239
      %316 = vmatprep.subr.bf16.mxu0 %v236
      %317 = vmatpush1.bf16.msra.mxu0 %v235
      %318 = vmatprep.subr.bf16.mxu0 %v232
      %319 = vmatpush1.bf16.msra.mxu0 %v231
      %320 = vmatprep.subr.bf16.mxu0 %v228
      %321 = vmatpush1.bf16.msra.mxu0 %v227
      %322 = vmatprep.subr.bf16.mxu0 %v224
      %323 = vmatpush1.bf16.msra.mxu0 %v223
      %324 = vmatprep.subr.bf16.mxu0 %v220
      %325 = vmatpush1.bf16.msra.mxu0 %v219
      %326 = vmatprep.subr.bf16.mxu0 %v216
      %327 = vmatpush1.bf16.msra.mxu0 %v215
      %328 = vmatprep.subr.bf16.mxu0 %v212
      %329 = vmatpush1.bf16.msra.mxu0 %v211
      %330 = vmatprep.subr.bf16.mxu0 0
      %331 = vmatpush2.bf16.msra.mxu0 0
      %332 = vmatprep.subr.bf16.mxu0 0
      %333 = vmatpush2.bf16.msra.mxu0 0
      %334 = vmatprep.subr.bf16.mxu0 0
      %335 = vmatpush2.bf16.msra.mxu0 0
      %336 = vmatprep.subr.bf16.mxu0 0
      %337 = vmatpush2.bf16.msra.mxu0 0
      %338 = vmatprep.subr.bf16.mxu0 0
      %339 = vmatpush2.bf16.msra.mxu0 0
      %340 = vmatprep.subr.bf16.mxu0 0
      %341 = vmatpush2.bf16.msra.mxu0 0
      %342 = vmatprep.subr.bf16.mxu0 0
      %343 = vmatpush2.bf16.msra.mxu0 0
      %344 = vmatprep.subr.bf16.mxu0 0
      %345 = vmatpush2.bf16.msra.mxu0 0
      %346 = vmatprep.mubr.bf16.mxu0 0
      %347 = vmatmul.mubr.bf16.gmra.mxu0 %v80
      %v348 = vpop.f32.mrf.mxu0
      %v349 = vadd.f32 0.0, %v348
      %v350 = vpop.f32.mrf.mxu0
      %v351 = vadd.f32 0.0, %v350
      %v352 = vpop.f32.mrf.mxu0
      %v353 = vpop.f32.mrf.mxu0
      %354 = vdwg.mxu0
      %v356 = vlaneseq
      %v357 = vshrl.u32 %v356, 7
      %v358 = vsub.s32 0, %v357
      %v359 = vrot.slane %v79, %v358
      %v360 = vlaneseq
      %v361 = vshrl.u32 %v360, 7
      %v362 = vsub.s32 1, %v361
      %v363 = vrot.slane %v79, %v362
      %v364 = vlaneseq
      %v365 = vshrl.u32 %v364, 7
      %v366 = vsub.s32 2, %v365
      %v367 = vrot.slane %v79, %v366
      %v368 = vlaneseq
      %v369 = vshrl.u32 %v368, 7
      %v370 = vsub.s32 3, %v369
      %v371 = vrot.slane %v79, %v370
      %v376 = vadd.f32 %v359, %v308
      %v377 = vadd.f32 %v363, %v310
      %v378 = vadd.f32 %v367, %v349
      %v379 = vadd.f32 %v371, %v351
      %380 = vst [vmem:[#allocation2] sm:$0xff] %v376
      %381 = vst [vmem:[#allocation2 + $0x8] sm:$0xff] %v377
      %382 = vst [vmem:[#allocation2 + $0x10] sm:$0xff] %v378
      %383 = vst [vmem:[#allocation2 + $0x18] sm:$0xff] %v379
    $region41: #{tpu_custom_call.1} parent=1 // pred_fallthru
      _
    %p384 = scmp.gt.s32.totalorder 0, 0
    %p385 = pnand %p73, %p384
    %p386 = pneg %p385
    // Predicated region
    $region42: #{tpu_custom_call.1} parent=1 // pred_check
      _
    $region43: #{tpu_custom_call.1} parent=1 // pred_check_branch
      %388 = sbr.rel (%p385) target = $region45
    $region44: #{tpu_custom_call.1} parent=1 // pred_region
      %v389 = vld [vmem:[#allocation2] sm:$0xff]
      %v390 = vld [vmem:[#allocation2 + $0x8] sm:$0xff]
      %v391 = vld [vmem:[#allocation2 + $0x10] sm:$0xff]
      %v392 = vld [vmem:[#allocation2 + $0x18] sm:$0xff]
      %v393 = vld [vmem:[#allocation3] sm:$0xf]
      %v394 = vld [vmem:[#allocation6] sm:$0xff]
      %v395 = vld [vmem:[#allocation6 + $0x8] sm:$0xff]
      %v396 = vld [vmem:[#allocation6 + $0x10] sm:$0xff]
      %v397 = vld [vmem:[#allocation6 + $0x18] sm:$0xff]
      %v398 = vld [vmem:[#allocation6 + $0x20] sm:$0xff]
      %v399 = vld [vmem:[#allocation6 + $0x28] sm:$0xff]
      %v400 = vld [vmem:[#allocation6 + $0x30] sm:$0xff]
      %v401 = vld [vmem:[#allocation6 + $0x38] sm:$0xff]
      %v402 = vld [vmem:[#allocation6 + $0x40] sm:$0xff]
      %v403 = vld [vmem:[#allocation6 + $0x48] sm:$0xff]
      %v404 = vld [vmem:[#allocation6 + $0x50] sm:$0xff]
      %v405 = vld [vmem:[#allocation6 + $0x58] sm:$0xff]
      %v406 = vld [vmem:[#allocation6 + $0x60] sm:$0xff]
      %v407 = vld [vmem:[#allocation6 + $0x68] sm:$0xff]
      %v408 = vld [vmem:[#allocation6 + $0x70] sm:$0xff]
      %v409 = vld [vmem:[#allocation6 + $0x78] sm:$0xff]
      %v410 = vld [vmem:[#allocation6 + $0x80] sm:$0xff]
      %v411 = vld [vmem:[#allocation6 + $0x88] sm:$0xff]
      %v412 = vld [vmem:[#allocation6 + $0x90] sm:$0xff]
      %v413 = vld [vmem:[#allocation6 + $0x98] sm:$0xff]
      %v414 = vld [vmem:[#allocation6 + $0xa0] sm:$0xff]
      %v415 = vld [vmem:[#allocation6 + $0xa8] sm:$0xff]
      %v416 = vld [vmem:[#allocation6 + $0xb0] sm:$0xff]
      %v417 = vld [vmem:[#allocation6 + $0xb8] sm:$0xff]
      %v418 = vld [vmem:[#allocation6 + $0xc0] sm:$0xff]
      %v419 = vld [vmem:[#allocation6 + $0xc8] sm:$0xff]
      %v420 = vld [vmem:[#allocation6 + $0xd0] sm:$0xff]
      %v421 = vld [vmem:[#allocation6 + $0xd8] sm:$0xff]
      %v422 = vld [vmem:[#allocation6 + $0xe0] sm:$0xff]
      %v423 = vld [vmem:[#allocation6 + $0xe8] sm:$0xff]
      %v424 = vld [vmem:[#allocation6 + $0xf0] sm:$0xff]
      %v425 = vld [vmem:[#allocation6 + $0xf8] sm:$0xff]
      %v458 = vunpack.c.l.b16 %v394
      %v459 = vunpack.c.h.b16 %v394
      %v460 = vunpack.c.l.b16 %v395
      %v461 = vunpack.c.h.b16 %v395
      %v462 = vunpack.c.l.b16 %v396
      %v463 = vunpack.c.h.b16 %v396
      %v464 = vunpack.c.l.b16 %v397
      %v465 = vunpack.c.h.b16 %v397
      %v466 = vunpack.c.l.b16 %v398
      %v467 = vunpack.c.h.b16 %v398
      %v468 = vunpack.c.l.b16 %v399
      %v469 = vunpack.c.h.b16 %v399
      %v470 = vunpack.c.l.b16 %v400
      %v471 = vunpack.c.h.b16 %v400
      %v472 = vunpack.c.l.b16 %v401
      %v473 = vunpack.c.h.b16 %v401
      %v474 = vunpack.c.l.b16 %v402
      %v475 = vunpack.c.h.b16 %v402
      %v476 = vunpack.c.l.b16 %v403
      %v477 = vunpack.c.h.b16 %v403
      %v478 = vunpack.c.l.b16 %v404
      %v479 = vunpack.c.h.b16 %v404
      %v480 = vunpack.c.l.b16 %v405
      %v481 = vunpack.c.h.b16 %v405
      %v482 = vunpack.c.l.b16 %v406
      %v483 = vunpack.c.h.b16 %v406
      %v484 = vunpack.c.l.b16 %v407
      %v485 = vunpack.c.h.b16 %v407
      %v486 = vunpack.c.l.b16 %v408
      %v487 = vunpack.c.h.b16 %v408
      %v488 = vunpack.c.l.b16 %v409
      %v489 = vunpack.c.h.b16 %v409
      %v490 = vunpack.c.l.b16 %v410
      %v491 = vunpack.c.h.b16 %v410
      %v492 = vunpack.c.l.b16 %v411
      %v493 = vunpack.c.h.b16 %v411
      %v494 = vunpack.c.l.b16 %v412
      %v495 = vunpack.c.h.b16 %v412
      %v496 = vunpack.c.l.b16 %v413
      %v497 = vunpack.c.h.b16 %v413
      %v498 = vunpack.c.l.b16 %v414
      %v499 = vunpack.c.h.b16 %v414
      %v500 = vunpack.c.l.b16 %v415
      %v501 = vunpack.c.h.b16 %v415
      %v502 = vunpack.c.l.b16 %v416
      %v503 = vunpack.c.h.b16 %v416
      %v504 = vunpack.c.l.b16 %v417
      %v505 = vunpack.c.h.b16 %v417
      %v506 = vunpack.c.l.b16 %v418
      %v507 = vunpack.c.h.b16 %v418
      %v508 = vunpack.c.l.b16 %v419
      %v509 = vunpack.c.h.b16 %v419
      %v510 = vunpack.c.l.b16 %v420
      %v511 = vunpack.c.h.b16 %v420
      %v512 = vunpack.c.l.b16 %v421
      %v513 = vunpack.c.h.b16 %v421
      %v514 = vunpack.c.l.b16 %v422
      %v515 = vunpack.c.h.b16 %v422
      %v516 = vunpack.c.l.b16 %v423
      %v517 = vunpack.c.h.b16 %v423
      %v518 = vunpack.c.l.b16 %v424
      %v519 = vunpack.c.h.b16 %v424
      %v520 = vunpack.c.l.b16 %v425
      %v521 = vunpack.c.h.b16 %v425
      %v522 = vpack.c.b16 %v462, %v458
      %v523 = vpack.c.b16 %v463, %v459
      %v524 = vpack.c.b16 %v464, %v460
      %v525 = vpack.c.b16 %v465, %v461
      %v526 = vpack.c.b16 %v470, %v466
      %v527 = vpack.c.b16 %v471, %v467
      %v528 = vpack.c.b16 %v472, %v468
      %v529 = vpack.c.b16 %v473, %v469
      %v530 = vpack.c.b16 %v478, %v474
      %v531 = vpack.c.b16 %v479, %v475
      %v532 = vpack.c.b16 %v480, %v476
      %v533 = vpack.c.b16 %v481, %v477
      %v534 = vpack.c.b16 %v486, %v482
      %v535 = vpack.c.b16 %v487, %v483
      %v536 = vpack.c.b16 %v488, %v484
      %v537 = vpack.c.b16 %v489, %v485
      %v538 = vpack.c.b16 %v494, %v490
      %v539 = vpack.c.b16 %v495, %v491
      %v540 = vpack.c.b16 %v496, %v492
      %v541 = vpack.c.b16 %v497, %v493
      %v542 = vpack.c.b16 %v502, %v498
      %v543 = vpack.c.b16 %v503, %v499
      %v544 = vpack.c.b16 %v504, %v500
      %v545 = vpack.c.b16 %v505, %v501
      %v546 = vpack.c.b16 %v510, %v506
      %v547 = vpack.c.b16 %v511, %v507
      %v548 = vpack.c.b16 %v512, %v508
      %v549 = vpack.c.b16 %v513, %v509
      %v550 = vpack.c.b16 %v518, %v514
      %v551 = vpack.c.b16 %v519, %v515
      %v552 = vpack.c.b16 %v520, %v516
      %v553 = vpack.c.b16 %v521, %v517
      %586 = vmatprep.subr.bf16.mxu0 %v551
      %587 = vmatpush1.bf16.msra.mxu0 %v550
      %588 = vmatprep.subr.bf16.mxu0 %v547
      %589 = vmatpush1.bf16.msra.mxu0 %v546
      %590 = vmatprep.subr.bf16.mxu0 %v543
      %591 = vmatpush1.bf16.msra.mxu0 %v542
      %592 = vmatprep.subr.bf16.mxu0 %v539
      %593 = vmatpush1.bf16.msra.mxu0 %v538
      %594 = vmatprep.subr.bf16.mxu0 %v535
      %595 = vmatpush1.bf16.msra.mxu0 %v534
      %596 = vmatprep.subr.bf16.mxu0 %v531
      %597 = vmatpush1.bf16.msra.mxu0 %v530
      %598 = vmatprep.subr.bf16.mxu0 %v527
      %599 = vmatpush1.bf16.msra.mxu0 %v526
      %600 = vmatprep.subr.bf16.mxu0 %v523
      %601 = vmatpush1.bf16.msra.mxu0 %v522
      %602 = vmatprep.subr.bf16.mxu0 0
      %603 = vmatpush2.bf16.msra.mxu0 0
      %604 = vmatprep.subr.bf16.mxu0 0
      %605 = vmatpush2.bf16.msra.mxu0 0
      %606 = vmatprep.subr.bf16.mxu0 0
      %607 = vmatpush2.bf16.msra.mxu0 0
      %608 = vmatprep.subr.bf16.mxu0 0
      %609 = vmatpush2.bf16.msra.mxu0 0
      %610 = vmatprep.subr.bf16.mxu0 0
      %611 = vmatpush2.bf16.msra.mxu0 0
      %612 = vmatprep.subr.bf16.mxu0 0
      %613 = vmatpush2.bf16.msra.mxu0 0
      %614 = vmatprep.subr.bf16.mxu0 0
      %615 = vmatpush2.bf16.msra.mxu0 0
      %616 = vmatprep.subr.bf16.mxu0 0
      %617 = vmatpush2.bf16.msra.mxu0 0
      %618 = vmatprep.mubr.bf16.mxu0 0
      %619 = vmatmul.mubr.bf16.gmra.mxu0 %v393
      %v620 = vpop.f32.mrf.mxu0
      %v621 = vadd.f32 0.0, %v620
      %v622 = vpop.f32.mrf.mxu0
      %v623 = vadd.f32 0.0, %v622
      %v624 = vpop.f32.mrf.mxu0
      %v625 = vpop.f32.mrf.mxu0
      %626 = vdwg.mxu0
      %627 = vmatprep.subr.bf16.mxu0 %v553
      %628 = vmatpush1.bf16.msra.mxu0 %v552
      %629 = vmatprep.subr.bf16.mxu0 %v549
      %630 = vmatpush1.bf16.msra.mxu0 %v548
      %631 = vmatprep.subr.bf16.mxu0 %v545
      %632 = vmatpush1.bf16.msra.mxu0 %v544
      %633 = vmatprep.subr.bf16.mxu0 %v541
      %634 = vmatpush1.bf16.msra.mxu0 %v540
      %635 = vmatprep.subr.bf16.mxu0 %v537
      %636 = vmatpush1.bf16.msra.mxu0 %v536
      %637 = vmatprep.subr.bf16.mxu0 %v533
      %638 = vmatpush1.bf16.msra.mxu0 %v532
      %639 = vmatprep.subr.bf16.mxu0 %v529
      %640 = vmatpush1.bf16.msra.mxu0 %v528
      %641 = vmatprep.subr.bf16.mxu0 %v525
      %642 = vmatpush1.bf16.msra.mxu0 %v524
      %643 = vmatprep.subr.bf16.mxu0 0
      %644 = vmatpush2.bf16.msra.mxu0 0
      %645 = vmatprep.subr.bf16.mxu0 0
      %646 = vmatpush2.bf16.msra.mxu0 0
      %647 = vmatprep.subr.bf16.mxu0 0
      %648 = vmatpush2.bf16.msra.mxu0 0
      %649 = vmatprep.subr.bf16.mxu0 0
      %650 = vmatpush2.bf16.msra.mxu0 0
      %651 = vmatprep.subr.bf16.mxu0 0
      %652 = vmatpush2.bf16.msra.mxu0 0
      %653 = vmatprep.subr.bf16.mxu0 0
      %654 = vmatpush2.bf16.msra.mxu0 0
      %655 = vmatprep.subr.bf16.mxu0 0
      %656 = vmatpush2.bf16.msra.mxu0 0
      %657 = vmatprep.subr.bf16.mxu0 0
      %658 = vmatpush2.bf16.msra.mxu0 0
      %659 = vmatprep.mubr.bf16.mxu0 0
      %660 = vmatmul.mubr.bf16.gmra.mxu0 %v393
      %v661 = vpop.f32.mrf.mxu0
      %v662 = vadd.f32 0.0, %v661
      %v663 = vpop.f32.mrf.mxu0
      %v664 = vadd.f32 0.0, %v663
      %v665 = vpop.f32.mrf.mxu0
      %v666 = vpop.f32.mrf.mxu0
      %667 = vdwg.mxu0
      %v668 = vadd.f32 %v389, %v621
      %v669 = vadd.f32 %v390, %v623
      %v670 = vadd.f32 %v391, %v662
      %v671 = vadd.f32 %v392, %v664
      %672 = vst [vmem:[#allocation2] sm:$0xff] %v668
      %673 = vst [vmem:[#allocation2 + $0x8] sm:$0xff] %v669
      %674 = vst [vmem:[#allocation2 + $0x10] sm:$0xff] %v670
      %675 = vst [vmem:[#allocation2 + $0x18] sm:$0xff] %v671
    $region45: #{tpu_custom_call.1} parent=1 // pred_fallthru
      _
    // Predicated region
    $region46: #{tpu_custom_call.1} parent=1 // pred_check
      %p676 = pneg %p74
    $region47: #{tpu_custom_call.1} parent=1 // pred_check_branch
      %678 = sbr.rel (%p676) target = $region49
    $region48: #{tpu_custom_call.1} parent=1 // pred_region
      %v679 = vld [vmem:[#allocation2] sm:$0xff]
      %v680 = vld [vmem:[#allocation2 + $0x8] sm:$0xff]
      %v681 = vld [vmem:[#allocation2 + $0x10] sm:$0xff]
      %v682 = vld [vmem:[#allocation2 + $0x18] sm:$0xff]
      %v683 = vmax.f32 %v679, 0.0
      %v684 = vmax.f32 %v680, 0.0
      %v685 = vmax.f32 %v681, 0.0
      %v686 = vmax.f32 %v682, 0.0
      %v687 = vpack.c.bf16 %v683, %v683
      %v688 = vpack.c.bf16 %v684, %v684
      %v689 = vpack.c.bf16 %v685, %v685
      %v690 = vpack.c.bf16 %v686, %v686
      %v691 = vld [vmem:[#allocation9] sm:$0xf]
      %v692 = vld [vmem:[#allocation9 + $0x4] sm:$0xf]
      %v693 = vld [vmem:[#allocation9 + $0x8] sm:$0xf]
      %v694 = vld [vmem:[#allocation9 + $0xc] sm:$0xf]
      %v695 = vld [vmem:[#allocation9 + $0x10] sm:$0xf]
      %v696 = vld [vmem:[#allocation9 + $0x14] sm:$0xf]
      %v697 = vld [vmem:[#allocation9 + $0x18] sm:$0xf]
      %v698 = vld [vmem:[#allocation9 + $0x1c] sm:$0xf]
      %v699 = vld [vmem:[#allocation9 + $0x20] sm:$0xf]
      %v700 = vld [vmem:[#allocation9 + $0x24] sm:$0xf]
      %v701 = vld [vmem:[#allocation9 + $0x28] sm:$0xf]
      %v702 = vld [vmem:[#allocation9 + $0x2c] sm:$0xf]
      %v703 = vld [vmem:[#allocation9 + $0x30] sm:$0xf]
      %v704 = vld [vmem:[#allocation9 + $0x34] sm:$0xf]
      %v705 = vld [vmem:[#allocation9 + $0x38] sm:$0xf]
      %v706 = vld [vmem:[#allocation9 + $0x3c] sm:$0xf]
      %v707 = vld [vmem:[#allocation9 + $0x40] sm:$0xf]
      %v708 = vld [vmem:[#allocation9 + $0x44] sm:$0xf]
      %v709 = vld [vmem:[#allocation9 + $0x48] sm:$0xf]
      %v710 = vld [vmem:[#allocation9 + $0x4c] sm:$0xf]
      %v711 = vld [vmem:[#allocation9 + $0x50] sm:$0xf]
      %v712 = vld [vmem:[#allocation9 + $0x54] sm:$0xf]
      %v713 = vld [vmem:[#allocation9 + $0x58] sm:$0xf]
      %v714 = vld [vmem:[#allocation9 + $0x5c] sm:$0xf]
      %v715 = vld [vmem:[#allocation9 + $0x60] sm:$0xf]
      %v716 = vld [vmem:[#allocation9 + $0x64] sm:$0xf]
      %v717 = vld [vmem:[#allocation9 + $0x68] sm:$0xf]
      %v718 = vld [vmem:[#allocation9 + $0x6c] sm:$0xf]
      %v719 = vld [vmem:[#allocation9 + $0x70] sm:$0xf]
      %v720 = vld [vmem:[#allocation9 + $0x74] sm:$0xf]
      %v721 = vld [vmem:[#allocation9 + $0x78] sm:$0xf]
      %v722 = vld [vmem:[#allocation9 + $0x7c] sm:$0xf]
      %v723 = vld [vmem:[#allocation9 + $0x80] sm:$0xf]
      %v724 = vld [vmem:[#allocation9 + $0x84] sm:$0xf]
      %v725 = vld [vmem:[#allocation9 + $0x88] sm:$0xf]
      %v726 = vld [vmem:[#allocation9 + $0x8c] sm:$0xf]
      %v727 = vld [vmem:[#allocation9 + $0x90] sm:$0xf]
      %v728 = vld [vmem:[#allocation9 + $0x94] sm:$0xf]
      %v729 = vld [vmem:[#allocation9 + $0x98] sm:$0xf]
      %v730 = vld [vmem:[#allocation9 + $0x9c] sm:$0xf]
      %v731 = vld [vmem:[#allocation9 + $0xa0] sm:$0xf]
      %v732 = vld [vmem:[#allocation9 + $0xa4] sm:$0xf]
      %v733 = vld [vmem:[#allocation9 + $0xa8] sm:$0xf]
      %v734 = vld [vmem:[#allocation9 + $0xac] sm:$0xf]
      %v735 = vld [vmem:[#allocation9 + $0xb0] sm:$0xf]
      %v736 = vld [vmem:[#allocation9 + $0xb4] sm:$0xf]
      %v737 = vld [vmem:[#allocation9 + $0xb8] sm:$0xf]
      %v738 = vld [vmem:[#allocation9 + $0xbc] sm:$0xf]
      %v739 = vld [vmem:[#allocation9 + $0xc0] sm:$0xf]
      %v740 = vld [vmem:[#allocation9 + $0xc4] sm:$0xf]
      %v741 = vld [vmem:[#allocation9 + $0xc8] sm:$0xf]
      %v742 = vld [vmem:[#allocation9 + $0xcc] sm:$0xf]
      %v743 = vld [vmem:[#allocation9 + $0xd0] sm:$0xf]
      %v744 = vld [vmem:[#allocation9 + $0xd4] sm:$0xf]
      %v745 = vld [vmem:[#allocation9 + $0xd8] sm:$0xf]
      %v746 = vld [vmem:[#allocation9 + $0xdc] sm:$0xf]
      %v747 = vld [vmem:[#allocation9 + $0xe0] sm:$0xf]
      %v748 = vld [vmem:[#allocation9 + $0xe4] sm:$0xf]
      %v749 = vld [vmem:[#allocation9 + $0xe8] sm:$0xf]
      %v750 = vld [vmem:[#allocation9 + $0xec] sm:$0xf]
      %v751 = vld [vmem:[#allocation9 + $0xf0] sm:$0xf]
      %v752 = vld [vmem:[#allocation9 + $0xf4] sm:$0xf]
      %v753 = vld [vmem:[#allocation9 + $0xf8] sm:$0xf]
      %v754 = vld [vmem:[#allocation9 + $0xfc] sm:$0xf]
      %v755 = vld [vmem:[%s4] sm:$0x1]
      %v757 = vlaneseq
      %v758 = vshrl.u32 %v757, 7
      %v759 = vsub.s32 0, %v758
      %v760 = vrot.slane %v755, %v759
      %v826 = vunpack.c.l.b16 %v691
      %v827 = vunpack.c.l.b16 %v692
      %v828 = vunpack.c.l.b16 %v693
      %v829 = vunpack.c.l.b16 %v694
      %v830 = vunpack.c.l.b16 %v695
      %v831 = vunpack.c.l.b16 %v696
      %v832 = vunpack.c.l.b16 %v697
      %v833 = vunpack.c.l.b16 %v698
      %v834 = vunpack.c.l.b16 %v699
      %v835 = vunpack.c.l.b16 %v700
      %v836 = vunpack.c.l.b16 %v701
      %v837 = vunpack.c.l.b16 %v702
      %v838 = vunpack.c.l.b16 %v703
      %v839 = vunpack.c.l.b16 %v704
      %v840 = vunpack.c.l.b16 %v705
      %v841 = vunpack.c.l.b16 %v706
      %v842 = vunpack.c.l.b16 %v707
      %v843 = vunpack.c.l.b16 %v708
      %v844 = vunpack.c.l.b16 %v709
      %v845 = vunpack.c.l.b16 %v710
      %v846 = vunpack.c.l.b16 %v711
      %v847 = vunpack.c.l.b16 %v712
      %v848 = vunpack.c.l.b16 %v713
      %v849 = vunpack.c.l.b16 %v714
      %v850 = vunpack.c.l.b16 %v715
      %v851 = vunpack.c.l.b16 %v716
      %v852 = vunpack.c.l.b16 %v717
      %v853 = vunpack.c.l.b16 %v718
      %v854 = vunpack.c.l.b16 %v719
      %v855 = vunpack.c.l.b16 %v720
      %v856 = vunpack.c.l.b16 %v721
      %v857 = vunpack.c.l.b16 %v722
      %v858 = vunpack.c.l.b16 %v723
      %v859 = vunpack.c.l.b16 %v724
      %v860 = vunpack.c.l.b16 %v725
      %v861 = vunpack.c.l.b16 %v726
      %v862 = vunpack.c.l.b16 %v727
      %v863 = vunpack.c.l.b16 %v728
      %v864 = vunpack.c.l.b16 %v729
      %v865 = vunpack.c.l.b16 %v730
      %v866 = vunpack.c.l.b16 %v731
      %v867 = vunpack.c.l.b16 %v732
      %v868 = vunpack.c.l.b16 %v733
      %v869 = vunpack.c.l.b16 %v734
      %v870 = vunpack.c.l.b16 %v735
      %v871 = vunpack.c.l.b16 %v736
      %v872 = vunpack.c.l.b16 %v737
      %v873 = vunpack.c.l.b16 %v738
      %v874 = vunpack.c.l.b16 %v739
      %v875 = vunpack.c.l.b16 %v740
      %v876 = vunpack.c.l.b16 %v741
      %v877 = vunpack.c.l.b16 %v742
      %v878 = vunpack.c.l.b16 %v743
      %v879 = vunpack.c.l.b16 %v744
      %v880 = vunpack.c.l.b16 %v745
      %v881 = vunpack.c.l.b16 %v746
      %v882 = vunpack.c.l.b16 %v747
      %v883 = vunpack.c.l.b16 %v748
      %v884 = vunpack.c.l.b16 %v749
      %v885 = vunpack.c.l.b16 %v750
      %v886 = vunpack.c.l.b16 %v751
      %v887 = vunpack.c.l.b16 %v752
      %v888 = vunpack.c.l.b16 %v753
      %v889 = vunpack.c.l.b16 %v754
      %v890 = vpack.c.b16 %v827, %v826
      %v891 = vpack.c.b16 %v829, %v828
      %v892 = vpack.c.b16 %v831, %v830
      %v893 = vpack.c.b16 %v833, %v832
      %v894 = vpack.c.b16 %v835, %v834
      %v895 = vpack.c.b16 %v837, %v836
      %v896 = vpack.c.b16 %v839, %v838
      %v897 = vpack.c.b16 %v841, %v840
      %v898 = vpack.c.b16 %v843, %v842
      %v899 = vpack.c.b16 %v845, %v844
      %v900 = vpack.c.b16 %v847, %v846
      %v901 = vpack.c.b16 %v849, %v848
      %v902 = vpack.c.b16 %v851, %v850
      %v903 = vpack.c.b16 %v853, %v852
      %v904 = vpack.c.b16 %v855, %v854
      %v905 = vpack.c.b16 %v857, %v856
      %v906 = vpack.c.b16 %v859, %v858
      %v907 = vpack.c.b16 %v861, %v860
      %v908 = vpack.c.b16 %v863, %v862
      %v909 = vpack.c.b16 %v865, %v864
      %v910 = vpack.c.b16 %v867, %v866
      %v911 = vpack.c.b16 %v869, %v868
      %v912 = vpack.c.b16 %v871, %v870
      %v913 = vpack.c.b16 %v873, %v872
      %v914 = vpack.c.b16 %v875, %v874
      %v915 = vpack.c.b16 %v877, %v876
      %v916 = vpack.c.b16 %v879, %v878
      %v917 = vpack.c.b16 %v881, %v880
      %v918 = vpack.c.b16 %v883, %v882
      %v919 = vpack.c.b16 %v885, %v884
      %v920 = vpack.c.b16 %v887, %v886
      %v921 = vpack.c.b16 %v889, %v888
      %954 = vmatprep.subr.bf16.mxu0 0
      %955 = vmatpush1.bf16.msra.mxu0 %v897
      %956 = vmatprep.subr.bf16.mxu0 0
      %957 = vmatpush1.bf16.msra.mxu0 %v896
      %958 = vmatprep.subr.bf16.mxu0 0
      %959 = vmatpush1.bf16.msra.mxu0 %v895
      %960 = vmatprep.subr.bf16.mxu0 0
      %961 = vmatpush1.bf16.msra.mxu0 %v894
      %962 = vmatprep.subr.bf16.mxu0 0
      %963 = vmatpush1.bf16.msra.mxu0 %v893
      %964 = vmatprep.subr.bf16.mxu0 0
      %965 = vmatpush1.bf16.msra.mxu0 %v892
      %966 = vmatprep.subr.bf16.mxu0 0
      %967 = vmatpush1.bf16.msra.mxu0 %v891
      %968 = vmatprep.subr.bf16.mxu0 0
      %969 = vmatpush1.bf16.msra.mxu0 %v890
      %970 = vmatprep.subr.bf16.mxu0 0
      %971 = vmatpush2.bf16.msra.mxu0 %v905
      %972 = vmatprep.subr.bf16.mxu0 0
      %973 = vmatpush2.bf16.msra.mxu0 %v904
      %974 = vmatprep.subr.bf16.mxu0 0
      %975 = vmatpush2.bf16.msra.mxu0 %v903
      %976 = vmatprep.subr.bf16.mxu0 0
      %977 = vmatpush2.bf16.msra.mxu0 %v902
      %978 = vmatprep.subr.bf16.mxu0 0
      %979 = vmatpush2.bf16.msra.mxu0 %v901
      %980 = vmatprep.subr.bf16.mxu0 0
      %981 = vmatpush2.bf16.msra.mxu0 %v900
      %982 = vmatprep.subr.bf16.mxu0 0
      %983 = vmatpush2.bf16.msra.mxu0 %v899
      %984 = vmatprep.subr.bf16.mxu0 0
      %985 = vmatpush2.bf16.msra.mxu0 %v898
      %986 = vmatprep.mubr.bf16.mxu0 %v688
      %987 = vmatmul.mubr.bf16.gmra.mxu0 %v687
      %v988 = vpop.f32.mrf.mxu0
      %v989 = vadd.f32 %v760, %v988
      %v990 = vpop.f32.mrf.mxu0
      %v991 = vpop.f32.mrf.mxu0
      %v992 = vpop.f32.mrf.mxu0
      %993 = vdwg.mxu0
      %994 = vmatprep.subr.bf16.mxu0 0
      %995 = vmatpush1.bf16.msra.mxu0 %v913
      %996 = vmatprep.subr.bf16.mxu0 0
      %997 = vmatpush1.bf16.msra.mxu0 %v912
      %998 = vmatprep.subr.bf16.mxu0 0
      %999 = vmatpush1.bf16.msra.mxu0 %v911
      %1000 = vmatprep.subr.bf16.mxu0 0
      %1001 = vmatpush1.bf16.msra.mxu0 %v910
      %1002 = vmatprep.subr.bf16.mxu0 0
      %1003 = vmatpush1.bf16.msra.mxu0 %v909
      %1004 = vmatprep.subr.bf16.mxu0 0
      %1005 = vmatpush1.bf16.msra.mxu0 %v908
      %1006 = vmatprep.subr.bf16.mxu0 0
      %1007 = vmatpush1.bf16.msra.mxu0 %v907
      %1008 = vmatprep.subr.bf16.mxu0 0
      %1009 = vmatpush1.bf16.msra.mxu0 %v906
      %1010 = vmatprep.subr.bf16.mxu0 0
      %1011 = vmatpush2.bf16.msra.mxu0 %v921
      %1012 = vmatprep.subr.bf16.mxu0 0
      %1013 = vmatpush2.bf16.msra.mxu0 %v920
      %1014 = vmatprep.subr.bf16.mxu0 0
      %1015 = vmatpush2.bf16.msra.mxu0 %v919
      %1016 = vmatprep.subr.bf16.mxu0 0
      %1017 = vmatpush2.bf16.msra.mxu0 %v918
      %1018 = vmatprep.subr.bf16.mxu0 0
      %1019 = vmatpush2.bf16.msra.mxu0 %v917
      %1020 = vmatprep.subr.bf16.mxu0 0
      %1021 = vmatpush2.bf16.msra.mxu0 %v916
      %1022 = vmatprep.subr.bf16.mxu0 0
      %1023 = vmatpush2.bf16.msra.mxu0 %v915
      %1024 = vmatprep.subr.bf16.mxu0 0
      %1025 = vmatpush2.bf16.msra.mxu0 %v914
      %1026 = vmatprep.mubr.bf16.mxu0 %v690
      %1027 = vmatmul.mubr.bf16.gmra.mxu0 %v689
      %v1028 = vpop.f32.mrf.mxu0
      %v1029 = vadd.f32 %v989, %v1028
      %v1030 = vpop.f32.mrf.mxu0
      %v1031 = vpop.f32.mrf.mxu0
      %v1032 = vpop.f32.mrf.mxu0
      %1033 = vdwg.mxu0
      %1034 = vst [vmem:[#allocation11] sm:$0xff] %v1029
    $region49: #{tpu_custom_call.1} parent=1 // pred_fallthru
      _
    // Predicated region
    $region50: #{tpu_custom_call.1} parent=1 // pred_check
      _
    $region51: #{tpu_custom_call.1} parent=1 // pred_check_branch
      %1036 = sbr.rel (0) target = $region53
    $region52: #{tpu_custom_call.1} parent=1 // pred_region
      %s1038 = ssub.s32 128, 128
      %1039 = vsyncadd [#allocation5], %s1038
      %s1041 = sshll.u32 [#allocation11], 4
      %s1042 = int_to_ptr.vmem [resolvable:$true] %s1041
      %1044 = dma.vmem_to_hbm [thread:$0]  %s1042, 128, %s5, [#allocation5]
    $region53: #{tpu_custom_call.1} parent=1 // pred_fallthru
      _
    // Predicated region
    $region54: #{tpu_custom_call.1} parent=1 // pred_check
      _
    $region55: #{tpu_custom_call.1} parent=1 // pred_check_branch
      %1046 = sbr.rel (0) target = $region57
    $region56: #{tpu_custom_call.1} parent=1 // pred_region
      %1047 = dma.done [#allocation5], 128
    $region57: #{tpu_custom_call.1} parent=1 // pred_fallthru
      _
    %1048 = vsyncpa [#allocation4], 1
    %1049 = vsyncpa [#allocation7], 1
    %1050 = vsyncpa [#allocation10], 1
    %1051 = vsyncpa [#allocation5], 1

</llo_original>
